<compile_context>
chip_gen: v6e
topology: v6e:2x2x1
jax: 0.10.0
libtpu: 0.0.40
codegen_flags: <defaults>
</compile_context>

<pallas_src>
import functools

import jax
import jax.numpy as jnp
from jax.experimental import pallas as pl
from jax.experimental.pallas import tpu as pltpu

HIDDEN = 100          # hidden width from the module: layers = [100, 100, 100]
HIDDEN_PAD = 128      # weights padded to lane width (zero-padded columns are inert)
HEAD_W = 8            # fused head output width: col 0 = mu, col 1 = log_var, rest zero
SUBLANE = 8
_MIB = 1024 * 1024
VMEM_TILE_BUDGET = 40 * _MIB       # keep per-step footprint v7x-safe (64 MiB VMEM)
VMEM_SCOPED_DEFAULT = 24 * _MIB    # below this, leave the compiler default alone


def _round_up(x, m):
    return (x + m - 1) // m * m


# --------------------------------------------------------------------------- #
# Kernel
# --------------------------------------------------------------------------- #
def _mlp_kernel(x_ref,
                w1_ref, b1_ref,
                w2_ref, b2_ref,
                w3_ref, b3_ref,
                wh_ref, bh_ref,
                out_ref):
    """3-layer ReLU MLP + fused (mu | log_var) head for one batch tile."""
    cdt = w1_ref.dtype                     # MXU input dtype (f32 or bf16)
    h = x_ref[...].astype(cdt)             # in-kernel cast: x stays f32 in HBM
    h = jnp.dot(h, w1_ref[...], preferred_element_type=jnp.float32) + b1_ref[...]
    h = jnp.maximum(h, 0.0).astype(cdt)
    h = jnp.dot(h, w2_ref[...], preferred_element_type=jnp.float32) + b2_ref[...]
    h = jnp.maximum(h, 0.0).astype(cdt)
    h = jnp.dot(h, w3_ref[...], preferred_element_type=jnp.float32) + b3_ref[...]
    h = jnp.maximum(h, 0.0).astype(cdt)
    # Fused head: column 0 = mu, column 1 = log_var (remaining 6 lanes are zero).
    out_ref[...] = (jnp.dot(h, wh_ref[...], preferred_element_type=jnp.float32)
                    + bh_ref[...])


# --------------------------------------------------------------------------- #
# One-time weight preparation (outside the per-call path)
# --------------------------------------------------------------------------- #
def _pad_2d(w, rows, cols, dtype):
    out = jnp.zeros((rows, cols), dtype)
    return out.at[: w.shape[0], : w.shape[1]].set(w.astype(dtype))


def _pad_1d(b, cols, dtype):
    out = jnp.zeros((1, cols), dtype)
    return out.at[0, : b.shape[0]].set(b.astype(dtype))


def prepare_params(params, use_bf16=False):
    """Transpose torch [out,in] weights to [in,out], zero-pad to lane width, and
    fuse the mu/log_var heads into one [128, 8] matrix.  Call once, reuse forever.

    use_bf16=True stores weights in bf16 (recommended for inference on v6e/v7x:
    ~2-3x MXU throughput, half the weight bytes, f32 accumulation kept).
    use_bf16=False is bit-exact vs. the torch module.
    """
    wdt = jnp.bfloat16 if use_bf16 else jnp.float32
    d_in = params["w1"].shape[1]
    prep = {
        "w1": _pad_2d(params["w1"].T, d_in, HIDDEN_PAD, wdt),
        "b1": _pad_1d(params["b1"], HIDDEN_PAD, jnp.float32),
        "w2": _pad_2d(params["w2"].T, HIDDEN_PAD, HIDDEN_PAD, wdt),
        "b2": _pad_1d(params["b2"], HIDDEN_PAD, jnp.float32),
        "w3": _pad_2d(params["w3"].T, HIDDEN_PAD, HIDDEN_PAD, wdt),
        "b3": _pad_1d(params["b3"], HIDDEN_PAD, jnp.float32),
    }
    wh = jnp.zeros((HIDDEN_PAD, HEAD_W), wdt)
    wh = wh.at[:HIDDEN, 0].set(params["wmu"][0].astype(wdt))
    wh = wh.at[:HIDDEN, 1].set(params["wlv"][0].astype(wdt))
    bh = jnp.zeros((1, HEAD_W), jnp.float32)
    bh = bh.at[0, 0].set(params["bmu"][0])
    bh = bh.at[0, 1].set(params["blv"][0])
    prep["wh"] = wh
    prep["bh"] = bh
    return prep


# --------------------------------------------------------------------------- #
# Tile selection (VMEM-budgeted, v7x megacore aware)
# --------------------------------------------------------------------------- #
def _choose_tile(B, d_in, batch_tile, x_itemsize, weight_bytes):
    def vmem_estimate(t):
        return (2 * t * d_in * x_itemsize          # double-buffered x tile
                + 2 * t * HEAD_W * 4               # double-buffered out tile
                + 2 * weight_bytes                 # resident weights/biases
                + 4 * t * HIDDEN_PAD * 4)          # activation temporaries (rough)

    if B <= SUBLANE:
        return B, vmem_estimate(B)                 # block == full array is legal

    tile = max(SUBLANE, min(_round_up(batch_tile, SUBLANE), _round_up(B, SUBLANE)))
    # Cap so a v7x (64 MiB VMEM) never OOMs / spills on this kernel.
    while tile > SUBLANE and vmem_estimate(tile) > VMEM_TILE_BUDGET:
        tile = max(SUBLANE, _round_up(tile // 2, SUBLANE))
    # v7x megacore: guarantee >=2 grid steps so both TensorCores get work.
    if pl.cdiv(B, tile) == 1 and tile > SUBLANE:
        tile = max(SUBLANE, _round_up(pl.cdiv(B, 2), SUBLANE))
    return tile, vmem_estimate(tile)


# --------------------------------------------------------------------------- #
# Forward wrapper
# --------------------------------------------------------------------------- #
@functools.partial(jax.jit, static_argnames=("batch_tile",))
def linear_network_forward(x_flat, prep, batch_tile=1024):
    """x_flat: [B, d_in] float32 (feature dim NOT padded).  prep: prepare_params().

    batch_tile: rows per grid step (default 1024; large tiles amortize per-step
    overhead on every TPU generation — the tile is auto-capped by a VMEM budget
    and auto-split so multi-step grids feed both v7x TensorCores).
    """
    B, d_in = x_flat.shape
    weight_bytes = sum(int(v.size) * v.dtype.itemsize
                       for v in jax.tree_util.tree_leaves(prep))
    tile_b, vmem_est = _choose_tile(B, d_in, batch_tile,
                                    x_flat.dtype.itemsize, weight_bytes)
    grid = (pl.cdiv(B, tile_b),)

    def resident(shape):
        # Constant index_map: fetched once, stays resident in VMEM across steps.
        return pl.BlockSpec(shape, lambda i: (0, 0))

    vmem_limit = None
    if vmem_est > VMEM_SCOPED_DEFAULT:
        vmem_limit = min(int(1.25 * vmem_est), 48 * _MIB)

    out = pl.pallas_call(
        _mlp_kernel,
        out_shape=jax.ShapeDtypeStruct((B, HEAD_W), jnp.float32),
        grid_spec=pltpu.PrefetchScalarGridSpec(
            num_scalar_prefetch=0,
            grid=grid,
            in_specs=[
                # x tile: last dim == full array dim (no 128-lane padding of d_in).
                pl.BlockSpec((tile_b, d_in), lambda i: (i, 0)),
                resident(prep["w1"].shape), resident(prep["b1"].shape),   # layer 1
                resident(prep["w2"].shape), resident(prep["b2"].shape),   # layer 2
                resident(prep["w3"].shape), resident(prep["b3"].shape),   # layer 3
                resident(prep["wh"].shape), resident(prep["bh"].shape),   # fused head
            ],
            out_specs=pl.BlockSpec((tile_b, HEAD_W), lambda i: (i, 0)),
        ),
        compiler_params=pltpu.CompilerParams(
            dimension_semantics=("parallel",),     # batch steps split across v7x TCs
            vmem_limit_bytes=vmem_limit,
        ),
    )(x_flat, prep["w1"], prep["b1"], prep["w2"], prep["b2"],
      prep["w3"], prep["b3"], prep["wh"], prep["bh"])

    mu = out[:, 0:1]
    log_var = out[:, 1:2]
    return mu, jnp.exp(log_var)        # exp on the [B, 1] slice, outside the kernel


# --------------------------------------------------------------------------- #
# Reference / init (torch-convention parameters)
# --------------------------------------------------------------------------- #
def init_params(key, d_in):
    """Deterministic init mimicking torch.nn.Linear default (uniform +/- 1/sqrt(fan_in))."""
    def linear(k, fan_in, fan_out):
        kw, kb = jax.random.split(k)
        bound = 1.0 / jnp.sqrt(fan_in)
        w = jax.random.uniform(kw, (fan_out, fan_in), jnp.float32, -bound, bound)
        b = jax.random.uniform(kb, (fan_out,), jnp.float32, -bound, bound)
        return w, b

    ks = jax.random.split(key, 5)
    w1, b1 = linear(ks[0], d_in, HIDDEN)
    w2, b2 = linear(ks[1], HIDDEN, HIDDEN)
    w3, b3 = linear(ks[2], HIDDEN, HIDDEN)
    wmu, bmu = linear(ks[3], HIDDEN, 1)
    wlv, blv = linear(ks[4], HIDDEN, 1)
    return dict(w1=w1, b1=b1, w2=w2, b2=b2, w3=w3, b3=b3,
                wmu=wmu, bmu=bmu, wlv=wlv, blv=blv)


def reference_forward(x_flat, p):
    """Pure-JAX reference matching the torch module."""
    h = jax.nn.relu(x_flat @ p["w1"].T + p["b1"])
    h = jax.nn.relu(h @ p["w2"].T + p["b2"])
    h = jax.nn.relu(h @ p["w3"].T + p["b3"])
    mu = h @ p["wmu"].T + p["bmu"]
    log_var = h @ p["wlv"].T + p["blv"]
    return mu, jnp.exp(log_var)


if __name__ == "__main__":
    key = jax.random.PRNGKey(0)
    k_x, k_p = jax.random.split(key)

    # input_size = (4, 8) -> flattened feature dim 32; batch = 8
    B, input_size = 8, (4, 8)
    d_in = int(input_size[0] * input_size[1])
    x = jax.random.normal(k_x, (B,) + input_size, jnp.float32)
    x_flat = x.reshape(B, d_in)

    params = init_params(k_p, d_in)
    prep_f32 = prepare_params(params, use_bf16=False)    # bit-exact vs torch semantics

    # f32 path, small batch (single grid step).
    mu, var = jax.block_until_ready(linear_network_forward(x_flat, prep_f32))
    mu_ref, var_ref = reference_forward(x_flat, params)
    assert mu.shape == (B, 1) and var.shape == (B, 1)
    assert jnp.allclose(mu, mu_ref, atol=1e-4, rtol=1e-4)
    assert jnp.allclose(var, var_ref, atol=1e-4, rtol=1e-4)

    # Non-tile-multiple batch: exercises the multi-step grid + masked boundary block.
    B2 = 20
    x2 = jax.random.normal(jax.random.fold_in(k_x, 1), (B2, d_in), jnp.float32)
    mu2, var2 = jax.block_until_ready(linear_network_forward(x2, prep_f32))
    mu2_ref, var2_ref = reference_forward(x2, params)
    assert mu2.shape == (B2, 1) and var2.shape == (B2, 1)
    assert jnp.allclose(mu2, mu2_ref, atol=1e-4, rtol=1e-4)
    assert jnp.allclose(var2, var2_ref, atol=1e-4, rtol=1e-4)

    # bf16 inference path (recommended on v6e/v7x): f32 accumulation, loose tolerance.
    prep_bf16 = prepare_params(params, use_bf16=True)
    mu3, var3 = jax.block_until_ready(linear_network_forward(x2, prep_bf16))
    assert mu3.shape == (B2, 1) and var3.shape == (B2, 1)
    assert bool(jnp.all(jnp.isfinite(mu3))) and bool(jnp.all(var3 > 0.0))
    assert jnp.allclose(mu3, mu2_ref, atol=1e-1, rtol=1e-1)
    assert jnp.allclose(var3, var2_ref, atol=1e-1, rtol=1e-1)

    print("KERNEL_OK")
</pallas_src>

<mosaic_0001>
module attributes {stable_mosaic.version = 11 : i64} {
  func.func @_mlp_kernel(%arg0: i32, %arg1: memref<8x32xf32, #tpu.memory_space<vmem>>, %arg2: memref<32x128xf32, #tpu.memory_space<vmem>>, %arg3: memref<1x128xf32, #tpu.memory_space<vmem>>, %arg4: memref<128x128xf32, #tpu.memory_space<vmem>>, %arg5: memref<1x128xf32, #tpu.memory_space<vmem>>, %arg6: memref<128x128xf32, #tpu.memory_space<vmem>>, %arg7: memref<1x128xf32, #tpu.memory_space<vmem>>, %arg8: memref<128x8xf32, #tpu.memory_space<vmem>>, %arg9: memref<1x8xf32, #tpu.memory_space<vmem>>, %arg10: memref<8x8xf32, #tpu.memory_space<vmem>>) attributes {dimension_semantics = [#tpu.dimension_semantics<parallel>], iteration_bounds = array<i64: 1>, scalar_prefetch = 0 : i64, scratch_operands = 0 : i64, tpu.core_type = #tpu.core_type<tc>, window_params = [{transform_indices = @transform_0, window_bounds = array<i64: 8, 32>}, {pipeline_mode = #tpu.pipeline_mode<synchronous>, transform_indices = @transform_1, window_bounds = array<i64: 32, 128>}, {pipeline_mode = #tpu.pipeline_mode<synchronous>, transform_indices = @transform_2, window_bounds = array<i64: 1, 128>}, {pipeline_mode = #tpu.pipeline_mode<synchronous>, transform_indices = @transform_3, window_bounds = array<i64: 128, 128>}, {pipeline_mode = #tpu.pipeline_mode<synchronous>, transform_indices = @transform_4, window_bounds = array<i64: 1, 128>}, {pipeline_mode = #tpu.pipeline_mode<synchronous>, transform_indices = @transform_5, window_bounds = array<i64: 128, 128>}, {pipeline_mode = #tpu.pipeline_mode<synchronous>, transform_indices = @transform_6, window_bounds = array<i64: 1, 128>}, {pipeline_mode = #tpu.pipeline_mode<synchronous>, transform_indices = @transform_7, window_bounds = array<i64: 128, 8>}, {pipeline_mode = #tpu.pipeline_mode<synchronous>, transform_indices = @transform_8, window_bounds = array<i64: 1, 8>}, {transform_indices = @transform_9, window_bounds = array<i64: 8, 8>}]} {
    %c0 = arith.constant 0 : index
    %c0_0 = arith.constant 0 : index
    %0 = vector.load %arg1[%c0, %c0_0] : memref<8x32xf32, #tpu.memory_space<vmem>>, vector<8x32xf32>
    %c0_1 = arith.constant 0 : index
    %c0_2 = arith.constant 0 : index
    %1 = vector.load %arg2[%c0_1, %c0_2] : memref<32x128xf32, #tpu.memory_space<vmem>>, vector<32x128xf32>
    %cst = arith.constant dense<0.000000e+00> : vector<8x128xf32>
    %2 = tpu.matmul %0, %1, %cst {dimension_numbers = #tpu.dot_dimension_numbers<[1], [0], [0], [1], [0, 0, 1, 1], [], []>} : vector<8x32xf32>, vector<32x128xf32>, vector<8x128xf32> -> vector<8x128xf32>
    %c0_3 = arith.constant 0 : index
    %c0_4 = arith.constant 0 : index
    %3 = vector.load %arg3[%c0_3, %c0_4] : memref<1x128xf32, #tpu.memory_space<vmem>>, vector<1x128xf32>
    %4 = vector.broadcast %3 : vector<1x128xf32> to vector<8x128xf32>
    %5 = arith.addf %2, %4 : vector<8x128xf32>
    %cst_5 = arith.constant 0.000000e+00 : f32
    %6 = vector.broadcast %cst_5 : f32 to vector<8x128xf32>
    %7 = arith.maximumf %5, %6 : vector<8x128xf32>
    %c0_6 = arith.constant 0 : index
    %c0_7 = arith.constant 0 : index
    %8 = vector.load %arg4[%c0_6, %c0_7] : memref<128x128xf32, #tpu.memory_space<vmem>>, vector<128x128xf32>
    %cst_8 = arith.constant dense<0.000000e+00> : vector<8x128xf32>
    %9 = tpu.matmul %7, %8, %cst_8 {dimension_numbers = #tpu.dot_dimension_numbers<[1], [0], [0], [1], [0, 0, 1, 1], [], []>} : vector<8x128xf32>, vector<128x128xf32>, vector<8x128xf32> -> vector<8x128xf32>
    %c0_9 = arith.constant 0 : index
    %c0_10 = arith.constant 0 : index
    %10 = vector.load %arg5[%c0_9, %c0_10] : memref<1x128xf32, #tpu.memory_space<vmem>>, vector<1x128xf32>
    %11 = vector.broadcast %10 : vector<1x128xf32> to vector<8x128xf32>
    %12 = arith.addf %9, %11 : vector<8x128xf32>
    %cst_11 = arith.constant 0.000000e+00 : f32
    %13 = vector.broadcast %cst_11 : f32 to vector<8x128xf32>
    %14 = arith.maximumf %12, %13 : vector<8x128xf32>
    %c0_12 = arith.constant 0 : index
    %c0_13 = arith.constant 0 : index
    %15 = vector.load %arg6[%c0_12, %c0_13] : memref<128x128xf32, #tpu.memory_space<vmem>>, vector<128x128xf32>
    %cst_14 = arith.constant dense<0.000000e+00> : vector<8x128xf32>
    %16 = tpu.matmul %14, %15, %cst_14 {dimension_numbers = #tpu.dot_dimension_numbers<[1], [0], [0], [1], [0, 0, 1, 1], [], []>} : vector<8x128xf32>, vector<128x128xf32>, vector<8x128xf32> -> vector<8x128xf32>
    %c0_15 = arith.constant 0 : index
    %c0_16 = arith.constant 0 : index
    %17 = vector.load %arg7[%c0_15, %c0_16] : memref<1x128xf32, #tpu.memory_space<vmem>>, vector<1x128xf32>
    %18 = vector.broadcast %17 : vector<1x128xf32> to vector<8x128xf32>
    %19 = arith.addf %16, %18 : vector<8x128xf32>
    %cst_17 = arith.constant 0.000000e+00 : f32
    %20 = vector.broadcast %cst_17 : f32 to vector<8x128xf32>
    %21 = arith.maximumf %19, %20 : vector<8x128xf32>
    %c0_18 = arith.constant 0 : index
    %c0_19 = arith.constant 0 : index
    %22 = vector.load %arg8[%c0_18, %c0_19] : memref<128x8xf32, #tpu.memory_space<vmem>>, vector<128x8xf32>
    %cst_20 = arith.constant dense<0.000000e+00> : vector<8x8xf32>
    %23 = tpu.matmul %21, %22, %cst_20 {dimension_numbers = #tpu.dot_dimension_numbers<[1], [0], [0], [1], [0, 0, 1, 1], [], []>} : vector<8x128xf32>, vector<128x8xf32>, vector<8x8xf32> -> vector<8x8xf32>
    %c0_21 = arith.constant 0 : index
    %c0_22 = arith.constant 0 : index
    %24 = vector.load %arg9[%c0_21, %c0_22] : memref<1x8xf32, #tpu.memory_space<vmem>>, vector<1x8xf32>
    %25 = vector.broadcast %24 : vector<1x8xf32> to vector<8x8xf32>
    %26 = arith.addf %23, %25 : vector<8x8xf32>
    %c0_23 = arith.constant 0 : index
    %c0_24 = arith.constant 0 : index
    %27 = vector.load %arg10[%c0_23, %c0_24] : memref<8x8xf32, #tpu.memory_space<vmem>>, vector<8x8xf32>
    tpu.vector_store %arg10[%c0_23, %c0_24], %26 {strides = array<i32>} : memref<8x8xf32, #tpu.memory_space<vmem>>, vector<8x8xf32>,
    return
  }
  func.func @transform_0(%arg0: i32) -> (i32, i32) {
    %c0_i32 = arith.constant 0 : i32
    %c0_i32_0 = arith.constant 0 : i32
    return %arg0, %c0_i32 : i32, i32
  }
  func.func @transform_1(%arg0: i32) -> (i32, i32) {
    %c0_i32 = arith.constant 0 : i32
    %c0_i32_0 = arith.constant 0 : i32
    %c0_i32_1 = arith.constant 0 : i32
    return %c0_i32, %c0_i32_0 : i32, i32
  }
  func.func @transform_2(%arg0: i32) -> (i32, i32) {
    %c0_i32 = arith.constant 0 : i32
    %c0_i32_0 = arith.constant 0 : i32
    %c0_i32_1 = arith.constant 0 : i32
    return %c0_i32, %c0_i32_0 : i32, i32
  }
  func.func @transform_3(%arg0: i32) -> (i32, i32) {
    %c0_i32 = arith.constant 0 : i32
    %c0_i32_0 = arith.constant 0 : i32
    %c0_i32_1 = arith.constant 0 : i32
    return %c0_i32, %c0_i32_0 : i32, i32
  }
  func.func @transform_4(%arg0: i32) -> (i32, i32) {
    %c0_i32 = arith.constant 0 : i32
    %c0_i32_0 = arith.constant 0 : i32
    %c0_i32_1 = arith.constant 0 : i32
    return %c0_i32, %c0_i32_0 : i32, i32
  }
  func.func @transform_5(%arg0: i32) -> (i32, i32) {
    %c0_i32 = arith.constant 0 : i32
    %c0_i32_0 = arith.constant 0 : i32
    %c0_i32_1 = arith.constant 0 : i32
    return %c0_i32, %c0_i32_0 : i32, i32
  }
  func.func @transform_6(%arg0: i32) -> (i32, i32) {
    %c0_i32 = arith.constant 0 : i32
    %c0_i32_0 = arith.constant 0 : i32
    %c0_i32_1 = arith.constant 0 : i32
    return %c0_i32, %c0_i32_0 : i32, i32
  }
  func.func @transform_7(%arg0: i32) -> (i32, i32) {
    %c0_i32 = arith.constant 0 : i32
    %c0_i32_0 = arith.constant 0 : i32
    %c0_i32_1 = arith.constant 0 : i32
    return %c0_i32, %c0_i32_0 : i32, i32
  }
  func.func @transform_8(%arg0: i32) -> (i32, i32) {
    %c0_i32 = arith.constant 0 : i32
    %c0_i32_0 = arith.constant 0 : i32
    %c0_i32_1 = arith.constant 0 : i32
    return %c0_i32, %c0_i32_0 : i32, i32
  }
  func.func @transform_9(%arg0: i32) -> (i32, i32) {
    %c0_i32 = arith.constant 0 : i32
    %c0_i32_0 = arith.constant 0 : i32
    return %arg0, %c0_i32 : i32, i32
  }
}

</mosaic_0001>

<llo_original>
// kernel: linear_network_forward.1
$region0: #{linear_network_forward.1}
  #allocation0 [shape = 'u32[]', space=smem, size = 0x4, offset = 0x4, fixed_abs, tag = 'smem constant byte address 0x4 - core index']
  #allocation1 [shape = 'u32[144,128]{1,0:T(1,128)}', space=vmem, size = 0x12000, scoped, tag = 'internal scratch']
  %s0 = inlined_call_operand.vmem [shape: f32[8,32], index: 0, kind: input, shape index: {}]
  %s1 = inlined_call_operand.hbm [shape: f32[32,128], index: 1, kind: input, shape index: {}]
  %s2 = inlined_call_operand.vmem [shape: f32[1,128], index: 2, kind: input, shape index: {}]
  %s3 = inlined_call_operand.vmem [shape: f32[128,128], index: 3, kind: input, shape index: {}]
  %s4 = inlined_call_operand.vmem [shape: f32[1,128], index: 4, kind: input, shape index: {}]
  %s5 = inlined_call_operand.hbm [shape: f32[128,128], index: 5, kind: input, shape index: {}]
  %s6 = inlined_call_operand.vmem [shape: f32[1,128], index: 6, kind: input, shape index: {}]
  %s7 = inlined_call_operand.vmem [shape: f32[128,8], index: 7, kind: input, shape index: {}]
  %s8 = inlined_call_operand.vmem [shape: f32[1,8], index: 8, kind: input, shape index: {}]
  %s9 = inlined_call_operand.vmem [shape: f32[8,8], index: 9, kind: output, shape index: {}]
  %s10 = sld [smem:[#allocation0]]
  $region54: #{linear_network_forward.1} parent=0
    _
  %s12 = ssub.s32 1, %s10
  %s13 = scalar_select 0, %s12, %s10
  $region1: #{linear_network_forward.1} parent=0
    #allocation2 [shape = 'u8[16384]{0}', space=vmem, size = 0x4000, scoped, tag = 'input window, operand 1, single buffered']
    #allocation3 [shape = 's32[1]{0}', space=sflag, size = 0x4, scoped, tag = 'scoped memory for linear_network_forward.1']
    #allocation4 [shape = 'u8[65536]{0}', space=vmem, size = 0x10000, scoped, tag = 'input window, operand 5, single buffered']
    #allocation5 [shape = 's32[1]{0}', space=sflag, size = 0x4, scoped, tag = 'scoped memory for linear_network_forward.1']
    %14 = vsyncpa [#allocation3], 0
    %15 = vsyncpa [#allocation5], 0
    // Predicated region
    $region2: #{linear_network_forward.1} parent=1 // pred_check
      _
    $region3: #{linear_network_forward.1} parent=1 // pred_check_branch
      %17 = sbr.rel (0) target = $region5
    $region4: #{linear_network_forward.1} parent=1 // pred_region
      _
    $region5: #{linear_network_forward.1} parent=1 // pred_fallthru
      _
    // Predicated region
    $region6: #{linear_network_forward.1} parent=1 // pred_check
      _
    $region7: #{linear_network_forward.1} parent=1 // pred_check_branch
      %19 = sbr.rel (0) target = $region9
    $region8: #{linear_network_forward.1} parent=1 // pred_region
      %s21 = ssub.s32 512, 512
      %22 = vsyncadd [#allocation3], %s21
      %s23 = sshll.u32 [#allocation2], 4
      %s24 = int_to_ptr.vmem [resolvable:$true] %s23
      %29 = dma.hbm_to_vmem [thread:$0]  %s1, 512, %s24, [#allocation3], 128, 128, 8
    $region9: #{linear_network_forward.1} parent=1 // pred_fallthru
      _
    // Predicated region
    $region10: #{linear_network_forward.1} parent=1 // pred_check
      _
    $region11: #{linear_network_forward.1} parent=1 // pred_check_branch
      %31 = sbr.rel (0) target = $region13
    $region12: #{linear_network_forward.1} parent=1 // pred_region
      _
    $region13: #{linear_network_forward.1} parent=1 // pred_fallthru
      _
    // Predicated region
    $region14: #{linear_network_forward.1} parent=1 // pred_check
      _
    $region15: #{linear_network_forward.1} parent=1 // pred_check_branch
      %33 = sbr.rel (0) target = $region17
    $region16: #{linear_network_forward.1} parent=1 // pred_region
      _
    $region17: #{linear_network_forward.1} parent=1 // pred_fallthru
      _
    // Predicated region
    $region18: #{linear_network_forward.1} parent=1 // pred_check
      _
    $region19: #{linear_network_forward.1} parent=1 // pred_check_branch
      %35 = sbr.rel (0) target = $region21
    $region20: #{linear_network_forward.1} parent=1 // pred_region
      _
    $region21: #{linear_network_forward.1} parent=1 // pred_fallthru
      _
    // Predicated region
    $region22: #{linear_network_forward.1} parent=1 // pred_check
      _
    $region23: #{linear_network_forward.1} parent=1 // pred_check_branch
      %37 = sbr.rel (0) target = $region25
    $region24: #{linear_network_forward.1} parent=1 // pred_region
      %s39 = ssub.s32 2048, 2048
      %40 = vsyncadd [#allocation5], %s39
      %s41 = sshll.u32 [#allocation4], 4
      %s42 = int_to_ptr.vmem [resolvable:$true] %s41
      %47 = dma.hbm_to_vmem [thread:$0]  %s5, 2048, %s42, [#allocation5], 128, 128, 8
    $region25: #{linear_network_forward.1} parent=1 // pred_fallthru
      _
    // Predicated region
    $region26: #{linear_network_forward.1} parent=1 // pred_check
      _
    $region27: #{linear_network_forward.1} parent=1 // pred_check_branch
      %49 = sbr.rel (0) target = $region29
    $region28: #{linear_network_forward.1} parent=1 // pred_region
      _
    $region29: #{linear_network_forward.1} parent=1 // pred_fallthru
      _
    // Predicated region
    $region30: #{linear_network_forward.1} parent=1 // pred_check
      _
    $region31: #{linear_network_forward.1} parent=1 // pred_check_branch
      %51 = sbr.rel (0) target = $region33
    $region32: #{linear_network_forward.1} parent=1 // pred_region
      _
    $region33: #{linear_network_forward.1} parent=1 // pred_fallthru
      _
    // Predicated region
    $region34: #{linear_network_forward.1} parent=1 // pred_check
      _
    $region35: #{linear_network_forward.1} parent=1 // pred_check_branch
      %53 = sbr.rel (0) target = $region37
    $region36: #{linear_network_forward.1} parent=1 // pred_region
      _
    $region37: #{linear_network_forward.1} parent=1 // pred_fallthru
      _
    // Predicated region
    $region38: #{linear_network_forward.1} parent=1 // pred_check
      _
    $region39: #{linear_network_forward.1} parent=1 // pred_check_branch
      %55 = sbr.rel (0) target = $region41
    $region40: #{linear_network_forward.1} parent=1 // pred_region
      %56 = dma.done [#allocation3], 512
    $region41: #{linear_network_forward.1} parent=1 // pred_fallthru
      _
    // Predicated region
    $region42: #{linear_network_forward.1} parent=1 // pred_check
      _
    $region43: #{linear_network_forward.1} parent=1 // pred_check_branch
      %58 = sbr.rel (0) target = $region45
    $region44: #{linear_network_forward.1} parent=1 // pred_region
      %59 = dma.done [#allocation5], 2048
    $region45: #{linear_network_forward.1} parent=1 // pred_fallthru
      _
    %v60 = vld [vmem:[%s0] sm:$0xff]
    %v61 = vld [vmem:[#allocation2] sm:$0xff]
    %v62 = vld [vmem:[#allocation2 + $0x8] sm:$0xff]
    %v63 = vld [vmem:[#allocation2 + $0x10] sm:$0xff]
    %v64 = vld [vmem:[#allocation2 + $0x18] sm:$0xff]
    %v65 = vld [vmem:[%s2] sm:$0x1]
    %v67 = vlaneseq
    %v68 = vshrl.u32 %v67, 7
    %v69 = vsub.s32 0, %v68
    %v70 = vrot.slane %v65, %v69
    %vm72 = vcmask 261120
    %v74 = vsel %vm72, %v60, 0
    %76 = vmatprep.subr.mxu0 0.0
    %77 = vmatpush1.msra.mxu0 0.0
    %78 = vmatprep.subr.mxu0 0.0
    %79 = vmatpush1.msra.mxu0 0.0
    %80 = vmatprep.subr.mxu0 0.0
    %81 = vmatpush1.msra.mxu0 0.0
    %82 = vmatprep.subr.mxu0 0.0
    %83 = vmatpush1.msra.mxu0 0.0
    %84 = vmatprep.subr.mxu0 0.0
    %85 = vmatpush1.msra.mxu0 0.0
    %86 = vmatprep.subr.mxu0 0.0
    %87 = vmatpush1.msra.mxu0 0.0
    %88 = vmatprep.subr.mxu0 0.0
    %89 = vmatpush1.msra.mxu0 0.0
    %90 = vmatprep.subr.mxu0 0.0
    %91 = vmatpush1.msra.mxu0 0.0
    %92 = vmatprep.subr.mxu0 0.0
    %93 = vmatpush1.msra.mxu0 0.0
    %94 = vmatprep.subr.mxu0 0.0
    %95 = vmatpush1.msra.mxu0 0.0
    %96 = vmatprep.subr.mxu0 0.0
    %97 = vmatpush1.msra.mxu0 0.0
    %98 = vmatprep.subr.mxu0 0.0
    %99 = vmatpush1.msra.mxu0 0.0
    %100 = vmatprep.subr.mxu0 0.0
    %101 = vmatpush1.msra.mxu0 %v64
    %102 = vmatprep.subr.mxu0 0.0
    %103 = vmatpush1.msra.mxu0 %v63
    %104 = vmatprep.subr.mxu0 0.0
    %105 = vmatpush1.msra.mxu0 %v62
    %106 = vmatprep.subr.mxu0 0.0
    %107 = vmatpush1.msra.mxu0 %v61
    %108 = vmatprep.subr.mxu0 0.0
    %109 = vmatpush2.msra.mxu0 0.0
    %110 = vmatprep.subr.mxu0 0.0
    %111 = vmatpush2.msra.mxu0 0.0
    %112 = vmatprep.subr.mxu0 0.0
    %113 = vmatpush2.msra.mxu0 0.0
    %114 = vmatprep.subr.mxu0 0.0
    %115 = vmatpush2.msra.mxu0 0.0
    %116 = vmatprep.subr.mxu0 0.0
    %117 = vmatpush2.msra.mxu0 0.0
    %118 = vmatprep.subr.mxu0 0.0
    %119 = vmatpush2.msra.mxu0 0.0
    %120 = vmatprep.subr.mxu0 0.0
    %121 = vmatpush2.msra.mxu0 0.0
    %122 = vmatprep.subr.mxu0 0.0
    %123 = vmatpush2.msra.mxu0 0.0
    %124 = vmatprep.subr.mxu0 0.0
    %125 = vmatpush2.msra.mxu0 0.0
    %126 = vmatprep.subr.mxu0 0.0
    %127 = vmatpush2.msra.mxu0 0.0
    %128 = vmatprep.subr.mxu0 0.0
    %129 = vmatpush2.msra.mxu0 0.0
    %130 = vmatprep.subr.mxu0 0.0
    %131 = vmatpush2.msra.mxu0 0.0
    %132 = vmatprep.subr.mxu0 0.0
    %133 = vmatpush2.msra.mxu0 0.0
    %134 = vmatprep.subr.mxu0 0.0
    %135 = vmatpush2.msra.mxu0 0.0
    %136 = vmatprep.subr.mxu0 0.0
    %137 = vmatpush2.msra.mxu0 0.0
    %138 = vmatprep.subr.mxu0 0.0
    %139 = vmatpush2.msra.mxu0 0.0
    %140 = vmatprep.mubr.f32.mxu0 0.0
    %141 = vmatmul.mubr.f32.gmra.mxu0 %v74
    %v142 = vpop.f32.mrf.mxu0
    %v143 = vadd.f32 %v70, %v142
    %v144 = vpop.f32.mrf.mxu0
    %145 = vdwg.mxu0
    %v146 = vmax.f32 %v143, 0.0
    %v147 = vld [vmem:[%s3] sm:$0xff]
    %v148 = vld [vmem:[%s3 + $0x8] sm:$0xff]
    %v149 = vld [vmem:[%s3 + $0x10] sm:$0xff]
    %v150 = vld [vmem:[%s3 + $0x18] sm:$0xff]
    %v151 = vld [vmem:[%s3 + $0x20] sm:$0xff]
    %v152 = vld [vmem:[%s3 + $0x28] sm:$0xff]
    %v153 = vld [vmem:[%s3 + $0x30] sm:$0xff]
    %v154 = vld [vmem:[%s3 + $0x38] sm:$0xff]
    %v155 = vld [vmem:[%s3 + $0x40] sm:$0xff]
    %v156 = vld [vmem:[%s3 + $0x48] sm:$0xff]
    %v157 = vld [vmem:[%s3 + $0x50] sm:$0xff]
    %v158 = vld [vmem:[%s3 + $0x58] sm:$0xff]
    %v159 = vld [vmem:[%s3 + $0x60] sm:$0xff]
    %v160 = vld [vmem:[%s3 + $0x68] sm:$0xff]
    %v161 = vld [vmem:[%s3 + $0x70] sm:$0xff]
    %v162 = vld [vmem:[%s3 + $0x78] sm:$0xff]
    %v163 = vld [vmem:[%s4] sm:$0x1]
    %v165 = vlaneseq
    %v166 = vshrl.u32 %v165, 7
    %v167 = vsub.s32 0, %v166
    %v168 = vrot.slane %v163, %v167
    %170 = vmatprep.subr.mxu0 0.0
    %171 = vmatpush1.msra.mxu0 %v162
    %172 = vmatprep.subr.mxu0 0.0
    %173 = vmatpush1.msra.mxu0 %v161
    %174 = vmatprep.subr.mxu0 0.0
    %175 = vmatpush1.msra.mxu0 %v160
    %176 = vmatprep.subr.mxu0 0.0
    %177 = vmatpush1.msra.mxu0 %v159
    %178 = vmatprep.subr.mxu0 0.0
    %179 = vmatpush1.msra.mxu0 %v158
    %180 = vmatprep.subr.mxu0 0.0
    %181 = vmatpush1.msra.mxu0 %v157
    %182 = vmatprep.subr.mxu0 0.0
    %183 = vmatpush1.msra.mxu0 %v156
    %184 = vmatprep.subr.mxu0 0.0
    %185 = vmatpush1.msra.mxu0 %v155
    %186 = vmatprep.subr.mxu0 0.0
    %187 = vmatpush1.msra.mxu0 %v154
    %188 = vmatprep.subr.mxu0 0.0
    %189 = vmatpush1.msra.mxu0 %v153
    %190 = vmatprep.subr.mxu0 0.0
    %191 = vmatpush1.msra.mxu0 %v152
    %192 = vmatprep.subr.mxu0 0.0
    %193 = vmatpush1.msra.mxu0 %v151
    %194 = vmatprep.subr.mxu0 0.0
    %195 = vmatpush1.msra.mxu0 %v150
    %196 = vmatprep.subr.mxu0 0.0
    %197 = vmatpush1.msra.mxu0 %v149
    %198 = vmatprep.subr.mxu0 0.0
    %199 = vmatpush1.msra.mxu0 %v148
    %200 = vmatprep.subr.mxu0 0.0
    %201 = vmatpush1.msra.mxu0 %v147
    %202 = vmatprep.subr.mxu0 0.0
    %203 = vmatpush2.msra.mxu0 0.0
    %204 = vmatprep.subr.mxu0 0.0
    %205 = vmatpush2.msra.mxu0 0.0
    %206 = vmatprep.subr.mxu0 0.0
    %207 = vmatpush2.msra.mxu0 0.0
    %208 = vmatprep.subr.mxu0 0.0
    %209 = vmatpush2.msra.mxu0 0.0
    %210 = vmatprep.subr.mxu0 0.0
    %211 = vmatpush2.msra.mxu0 0.0
    %212 = vmatprep.subr.mxu0 0.0
    %213 = vmatpush2.msra.mxu0 0.0
    %214 = vmatprep.subr.mxu0 0.0
    %215 = vmatpush2.msra.mxu0 0.0
    %216 = vmatprep.subr.mxu0 0.0
    %217 = vmatpush2.msra.mxu0 0.0
    %218 = vmatprep.subr.mxu0 0.0
    %219 = vmatpush2.msra.mxu0 0.0
    %220 = vmatprep.subr.mxu0 0.0
    %221 = vmatpush2.msra.mxu0 0.0
    %222 = vmatprep.subr.mxu0 0.0
    %223 = vmatpush2.msra.mxu0 0.0
    %224 = vmatprep.subr.mxu0 0.0
    %225 = vmatpush2.msra.mxu0 0.0
    %226 = vmatprep.subr.mxu0 0.0
    %227 = vmatpush2.msra.mxu0 0.0
    %228 = vmatprep.subr.mxu0 0.0
    %229 = vmatpush2.msra.mxu0 0.0
    %230 = vmatprep.subr.mxu0 0.0
    %231 = vmatpush2.msra.mxu0 0.0
    %232 = vmatprep.subr.mxu0 0.0
    %233 = vmatpush2.msra.mxu0 0.0
    %234 = vmatprep.mubr.f32.mxu0 0.0
    %235 = vmatmul.mubr.f32.gmra.mxu0 %v146
    %v236 = vpop.f32.mrf.mxu0
    %v237 = vadd.f32 %v168, %v236
    %v238 = vpop.f32.mrf.mxu0
    %239 = vdwg.mxu0
    %v240 = vmax.f32 %v237, 0.0
    %v241 = vld [vmem:[#allocation4] sm:$0xff]
    %v242 = vld [vmem:[#allocation4 + $0x8] sm:$0xff]
    %v243 = vld [vmem:[#allocation4 + $0x10] sm:$0xff]
    %v244 = vld [vmem:[#allocation4 + $0x18] sm:$0xff]
    %v245 = vld [vmem:[#allocation4 + $0x20] sm:$0xff]
    %v246 = vld [vmem:[#allocation4 + $0x28] sm:$0xff]
    %v247 = vld [vmem:[#allocation4 + $0x30] sm:$0xff]
    %v248 = vld [vmem:[#allocation4 + $0x38] sm:$0xff]
    %v249 = vld [vmem:[#allocation4 + $0x40] sm:$0xff]
    %v250 = vld [vmem:[#allocation4 + $0x48] sm:$0xff]
    %v251 = vld [vmem:[#allocation4 + $0x50] sm:$0xff]
    %v252 = vld [vmem:[#allocation4 + $0x58] sm:$0xff]
    %v253 = vld [vmem:[#allocation4 + $0x60] sm:$0xff]
    %v254 = vld [vmem:[#allocation4 + $0x68] sm:$0xff]
    %v255 = vld [vmem:[#allocation4 + $0x70] sm:$0xff]
    %v256 = vld [vmem:[#allocation4 + $0x78] sm:$0xff]
    %v257 = vld [vmem:[%s6] sm:$0x1]
    %v259 = vlaneseq
    %v260 = vshrl.u32 %v259, 7
    %v261 = vsub.s32 0, %v260
    %v262 = vrot.slane %v257, %v261
    %264 = vmatprep.subr.mxu0 0.0
    %265 = vmatpush1.msra.mxu0 %v256
    %266 = vmatprep.subr.mxu0 0.0
    %267 = vmatpush1.msra.mxu0 %v255
    %268 = vmatprep.subr.mxu0 0.0
    %269 = vmatpush1.msra.mxu0 %v254
    %270 = vmatprep.subr.mxu0 0.0
    %271 = vmatpush1.msra.mxu0 %v253
    %272 = vmatprep.subr.mxu0 0.0
    %273 = vmatpush1.msra.mxu0 %v252
    %274 = vmatprep.subr.mxu0 0.0
    %275 = vmatpush1.msra.mxu0 %v251
    %276 = vmatprep.subr.mxu0 0.0
    %277 = vmatpush1.msra.mxu0 %v250
    %278 = vmatprep.subr.mxu0 0.0
    %279 = vmatpush1.msra.mxu0 %v249
    %280 = vmatprep.subr.mxu0 0.0
    %281 = vmatpush1.msra.mxu0 %v248
    %282 = vmatprep.subr.mxu0 0.0
    %283 = vmatpush1.msra.mxu0 %v247
    %284 = vmatprep.subr.mxu0 0.0
    %285 = vmatpush1.msra.mxu0 %v246
    %286 = vmatprep.subr.mxu0 0.0
    %287 = vmatpush1.msra.mxu0 %v245
    %288 = vmatprep.subr.mxu0 0.0
    %289 = vmatpush1.msra.mxu0 %v244
    %290 = vmatprep.subr.mxu0 0.0
    %291 = vmatpush1.msra.mxu0 %v243
    %292 = vmatprep.subr.mxu0 0.0
    %293 = vmatpush1.msra.mxu0 %v242
    %294 = vmatprep.subr.mxu0 0.0
    %295 = vmatpush1.msra.mxu0 %v241
    %296 = vmatprep.subr.mxu0 0.0
    %297 = vmatpush2.msra.mxu0 0.0
    %298 = vmatprep.subr.mxu0 0.0
    %299 = vmatpush2.msra.mxu0 0.0
    %300 = vmatprep.subr.mxu0 0.0
    %301 = vmatpush2.msra.mxu0 0.0
    %302 = vmatprep.subr.mxu0 0.0
    %303 = vmatpush2.msra.mxu0 0.0
    %304 = vmatprep.subr.mxu0 0.0
    %305 = vmatpush2.msra.mxu0 0.0
    %306 = vmatprep.subr.mxu0 0.0
    %307 = vmatpush2.msra.mxu0 0.0
    %308 = vmatprep.subr.mxu0 0.0
    %309 = vmatpush2.msra.mxu0 0.0
    %310 = vmatprep.subr.mxu0 0.0
    %311 = vmatpush2.msra.mxu0 0.0
    %312 = vmatprep.subr.mxu0 0.0
    %313 = vmatpush2.msra.mxu0 0.0
    %314 = vmatprep.subr.mxu0 0.0
    %315 = vmatpush2.msra.mxu0 0.0
    %316 = vmatprep.subr.mxu0 0.0
    %317 = vmatpush2.msra.mxu0 0.0
    %318 = vmatprep.subr.mxu0 0.0
    %319 = vmatpush2.msra.mxu0 0.0
    %320 = vmatprep.subr.mxu0 0.0
    %321 = vmatpush2.msra.mxu0 0.0
    %322 = vmatprep.subr.mxu0 0.0
    %323 = vmatpush2.msra.mxu0 0.0
    %324 = vmatprep.subr.mxu0 0.0
    %325 = vmatpush2.msra.mxu0 0.0
    %326 = vmatprep.subr.mxu0 0.0
    %327 = vmatpush2.msra.mxu0 0.0
    %328 = vmatprep.mubr.f32.mxu0 0.0
    %329 = vmatmul.mubr.f32.gmra.mxu0 %v240
    %v330 = vpop.f32.mrf.mxu0
    %v331 = vadd.f32 %v262, %v330
    %v332 = vpop.f32.mrf.mxu0
    %333 = vdwg.mxu0
    %v334 = vmax.f32 %v331, 0.0
    %v335 = vld [vmem:[%s7] sm:$0xff]
    %v336 = vld [vmem:[%s7 + $0x8] sm:$0xff]
    %v337 = vld [vmem:[%s7 + $0x10] sm:$0xff]
    %v338 = vld [vmem:[%s7 + $0x18] sm:$0xff]
    %v339 = vld [vmem:[%s7 + $0x20] sm:$0xff]
    %v340 = vld [vmem:[%s7 + $0x28] sm:$0xff]
    %v341 = vld [vmem:[%s7 + $0x30] sm:$0xff]
    %v342 = vld [vmem:[%s7 + $0x38] sm:$0xff]
    %v343 = vld [vmem:[%s7 + $0x40] sm:$0xff]
    %v344 = vld [vmem:[%s7 + $0x48] sm:$0xff]
    %v345 = vld [vmem:[%s7 + $0x50] sm:$0xff]
    %v346 = vld [vmem:[%s7 + $0x58] sm:$0xff]
    %v347 = vld [vmem:[%s7 + $0x60] sm:$0xff]
    %v348 = vld [vmem:[%s7 + $0x68] sm:$0xff]
    %v349 = vld [vmem:[%s7 + $0x70] sm:$0xff]
    %v350 = vld [vmem:[%s7 + $0x78] sm:$0xff]
    %v351 = vld [vmem:[%s8] sm:$0x1]
    %v353 = vlaneseq
    %v354 = vshrl.u32 %v353, 7
    %v355 = vsub.s32 0, %v354
    %v356 = vrot.slane %v351, %v355
    %358 = vmatprep.subr.mxu0 0.0
    %359 = vmatpush1.msra.mxu0 %v350
    %360 = vmatprep.subr.mxu0 0.0
    %361 = vmatpush1.msra.mxu0 %v349
    %362 = vmatprep.subr.mxu0 0.0
    %363 = vmatpush1.msra.mxu0 %v348
    %364 = vmatprep.subr.mxu0 0.0
    %365 = vmatpush1.msra.mxu0 %v347
    %366 = vmatprep.subr.mxu0 0.0
    %367 = vmatpush1.msra.mxu0 %v346
    %368 = vmatprep.subr.mxu0 0.0
    %369 = vmatpush1.msra.mxu0 %v345
    %370 = vmatprep.subr.mxu0 0.0
    %371 = vmatpush1.msra.mxu0 %v344
    %372 = vmatprep.subr.mxu0 0.0
    %373 = vmatpush1.msra.mxu0 %v343
    %374 = vmatprep.subr.mxu0 0.0
    %375 = vmatpush1.msra.mxu0 %v342
    %376 = vmatprep.subr.mxu0 0.0
    %377 = vmatpush1.msra.mxu0 %v341
    %378 = vmatprep.subr.mxu0 0.0
    %379 = vmatpush1.msra.mxu0 %v340
    %380 = vmatprep.subr.mxu0 0.0
    %381 = vmatpush1.msra.mxu0 %v339
    %382 = vmatprep.subr.mxu0 0.0
    %383 = vmatpush1.msra.mxu0 %v338
    %384 = vmatprep.subr.mxu0 0.0
    %385 = vmatpush1.msra.mxu0 %v337
    %386 = vmatprep.subr.mxu0 0.0
    %387 = vmatpush1.msra.mxu0 %v336
    %388 = vmatprep.subr.mxu0 0.0
    %389 = vmatpush1.msra.mxu0 %v335
    %390 = vmatprep.subr.mxu0 0.0
    %391 = vmatpush2.msra.mxu0 0.0
    %392 = vmatprep.subr.mxu0 0.0
    %393 = vmatpush2.msra.mxu0 0.0
    %394 = vmatprep.subr.mxu0 0.0
    %395 = vmatpush2.msra.mxu0 0.0
    %396 = vmatprep.subr.mxu0 0.0
    %397 = vmatpush2.msra.mxu0 0.0
    %398 = vmatprep.subr.mxu0 0.0
    %399 = vmatpush2.msra.mxu0 0.0
    %400 = vmatprep.subr.mxu0 0.0
    %401 = vmatpush2.msra.mxu0 0.0
    %402 = vmatprep.subr.mxu0 0.0
    %403 = vmatpush2.msra.mxu0 0.0
    %404 = vmatprep.subr.mxu0 0.0
    %405 = vmatpush2.msra.mxu0 0.0
    %406 = vmatprep.subr.mxu0 0.0
    %407 = vmatpush2.msra.mxu0 0.0
    %408 = vmatprep.subr.mxu0 0.0
    %409 = vmatpush2.msra.mxu0 0.0
    %410 = vmatprep.subr.mxu0 0.0
    %411 = vmatpush2.msra.mxu0 0.0
    %412 = vmatprep.subr.mxu0 0.0
    %413 = vmatpush2.msra.mxu0 0.0
    %414 = vmatprep.subr.mxu0 0.0
    %415 = vmatpush2.msra.mxu0 0.0
    %416 = vmatprep.subr.mxu0 0.0
    %417 = vmatpush2.msra.mxu0 0.0
    %418 = vmatprep.subr.mxu0 0.0
    %419 = vmatpush2.msra.mxu0 0.0
    %420 = vmatprep.subr.mxu0 0.0
    %421 = vmatpush2.msra.mxu0 0.0
    %422 = vmatprep.mubr.f32.mxu0 0.0
    %423 = vmatmul.mubr.f32.gmra.mxu0 %v334
    %v424 = vpop.f32.mrf.mxu0
    %v425 = vadd.f32 %v356, %v424
    %v426 = vpop.f32.mrf.mxu0
    %427 = vdwg.mxu0
    %vm428 = vcmask 64512
    %429 = vst.msk [vmem:[%s9] sm:$0xff] %vm428, %v425
    // Predicated region
    $region46: #{linear_network_forward.1} parent=1 // pred_check
      _
    $region47: #{linear_network_forward.1} parent=1 // pred_check_branch
      %431 = sbr.rel (0) target = $region49
    $region48: #{linear_network_forward.1} parent=1 // pred_region
      _
    $region49: #{linear_network_forward.1} parent=1 // pred_fallthru
      _
    // Predicated region
    $region50: #{linear_network_forward.1} parent=1 // pred_check
      _
    $region51: #{linear_network_forward.1} parent=1 // pred_check_branch
      %433 = sbr.rel (0) target = $region53
    $region52: #{linear_network_forward.1} parent=1 // pred_region
      _
    $region53: #{linear_network_forward.1} parent=1 // pred_fallthru
      _
    %434 = vsyncpa [#allocation3], 1
    %435 = vsyncpa [#allocation5], 1

</llo_original>
